<compile_context>
chip_gen: v7x
topology: tpu7x:2x2x1
jax: 0.10.0
libtpu: 0.0.40
codegen_flags: <defaults>
</compile_context>

<pallas_src>
import functools
import math

import jax
import jax.numpy as jnp
from jax import lax
from jax.experimental import pallas as pl
from jax.experimental.pallas import tpu as pltpu

_TWO_PI = 2.0 * math.pi
_LANE = 128
_VMEM_LIMIT_BYTES = 32 * 1024 * 1024   # explicit scoped-VMEM limit (fits every gen)


# ---------------------------------------------------------------------------
# Fused sin/cos: one shared quadrant reduction feeding two short polynomials.
# Max abs error ~2.5e-7 on the argument ranges produced here (|x| small).
# ---------------------------------------------------------------------------
def _sincos(x):
    q = jnp.floor(x * (2.0 / math.pi) + 0.5)
    # 3-term Cody-Waite reduction by pi/2 (cephes constants, exact products).
    r = x - q * 1.5703125
    r = r - q * 4.837512969970703125e-4
    r = r - q * 7.54978995489188e-8
    r2 = r * r
    # sinf / cosf minimax polynomials on [-pi/4, pi/4].
    sin_p = r * (1.0 + r2 * (-1.6666654611e-1
                 + r2 * (8.3321608736e-3 + r2 * (-1.9515295891e-4))))
    cos_p = 1.0 + r2 * (-0.5 + r2 * (4.166664568298827e-2
                 + r2 * (-1.388731625493765e-3 + r2 * 2.443315711809948e-5)))
    qm = q - 4.0 * jnp.floor(q * 0.25)            # q mod 4, in {0,1,2,3}
    swap = (qm == 1.0) | (qm == 3.0)
    sin_sign = jnp.where((qm == 2.0) | (qm == 3.0), -1.0, 1.0)
    cos_sign = jnp.where((qm == 1.0) | (qm == 2.0), -1.0, 1.0)
    sin_x = jnp.where(swap, cos_p, sin_p) * sin_sign
    cos_x = jnp.where(swap, sin_p, cos_p) * cos_sign
    return sin_x, cos_x


# ---------------------------------------------------------------------------
# Kernels
# ---------------------------------------------------------------------------
def _fpe_kernel_rows(pos_ref, w_ref, out_ref):
    # pos_ref: (tn, S)       flattened grid positions in [0, 1]
    # w_ref:   (S, H/2)      pre-scaled weight (2*pi*scale folded in), transposed
    # out_ref: (tn, H)       [sin | cos] along lanes
    half_h = w_ref.shape[1]
    # Chunk the lane dim: bounds the x_proj temp to (tn, 128) and keeps every
    # store an unmasked full-lane vst when H/2 is a multiple of 128.
    chunk = _LANE if half_h % _LANE == 0 else half_h
    pos = pos_ref[...]
    for j in range(half_h // chunk):                       # static, unrolled
        xp = jnp.dot(pos, w_ref[:, j * chunk:(j + 1) * chunk],
                     preferred_element_type=jnp.float32)   # (tn, chunk)
        s, c = _sincos(xp)
        out_ref[:, j * chunk:(j + 1) * chunk] = s.astype(out_ref.dtype)
        out_ref[:, half_h + j * chunk:half_h + (j + 1) * chunk] = \
            c.astype(out_ref.dtype)


def _fpe_kernel_packed(pos2_ref, wbig_ref, out_ref, *, h, half_h):
    # Small-H path (k = 128 // H positions packed per output row).
    # pos2_ref: (tr, k*S)    k consecutive positions' coords, flattened
    # wbig_ref: (k*S, 128)   block-diagonal weight, sin & cos halves duplicated
    # out_ref:  (tr, 128)    row-major identical to (tr*k, H)
    x = jnp.dot(pos2_ref[...], wbig_ref[...],
                preferred_element_type=jnp.float32)        # (tr, 128)
    s, c = _sincos(x)
    lane = lax.broadcasted_iota(jnp.int32, x.shape, 1)
    sin_mask = (lane & (h - 1)) < half_h                   # h is a power of two here
    out_ref[...] = jnp.where(sin_mask, s, c).astype(out_ref.dtype)


# ---------------------------------------------------------------------------
# Tile picker: honor the VMEM budget, keep >= target_steps grid steps when the
# problem permits (v7x: 2 TCs share the "parallel" axis), never exceed N.
# ---------------------------------------------------------------------------
def _pick_tile(total_rows, bytes_per_row, budget_bytes, align, min_tile,
               target_steps=8):
    by_budget = (budget_bytes // bytes_per_row) // align * align
    by_steps = pl.cdiv(pl.cdiv(total_rows, target_steps), align) * align
    t = max(min(by_budget, by_steps), min_tile)
    if t >= total_rows:
        return total_rows          # full-extent block is always legal
    return t


# ---------------------------------------------------------------------------
# Wrapper
# ---------------------------------------------------------------------------
def learnable_scale_fpe(positions_flat, pos_emb, scale, *,
                        vmem_budget_bytes=6 * 1024 * 1024,
                        out_dtype=jnp.float32):
    """positions_flat: (N, S); pos_emb: (H/2, S); scale: (S,) -> (1, N, H)."""
    n, s = positions_flat.shape
    half_h, s2 = pos_emb.shape
    assert s == s2, (s, s2)
    h = 2 * half_h

    pos = positions_flat.astype(jnp.float32)
    # Fold 2*pi and the learnable scale into the tiny weight once, in the
    # wrapper (the grid is a sequential loop; doing it per step is wasted VALU).
    w_scaled = pos_emb.astype(jnp.float32) * \
        (scale.astype(jnp.float32) * _TWO_PI)[None, :]          # (H/2, S)

    params = pltpu.CompilerParams(dimension_semantics=("parallel",),
                                  vmem_limit_bytes=_VMEM_LIMIT_BYTES)

    if h < _LANE and _LANE % h == 0 and n % (_LANE // h) == 0:
        # ---- packed small-H path: lane-dense (N/k, 128) output ----
        k = _LANE // h
        nr = n // k
        pos2 = pos.reshape(nr, k * s)                           # free reshape
        wt = w_scaled.T                                         # (S, H/2)
        wbig = jnp.zeros((k * s, _LANE), jnp.float32)
        for j in range(k):                                      # tiny, built once
            wbig = wbig.at[j * s:(j + 1) * s, j * h:j * h + half_h].set(wt)
            wbig = wbig.at[j * s:(j + 1) * s, j * h + half_h:(j + 1) * h].set(wt)

        # per packed row (f32): out 2x128, lane-padded pos2 2x128, temps ~3x128
        bytes_per_row = 4 * (2 * _LANE + 2 * _LANE + 3 * _LANE)
        tr = _pick_tile(nr, bytes_per_row, vmem_budget_bytes, align=8, min_tile=64)
        grid = (pl.cdiv(nr, tr),)
        out_packed = pl.pallas_call(
            functools.partial(_fpe_kernel_packed, h=h, half_h=half_h),
            out_shape=jax.ShapeDtypeStruct((nr, _LANE), out_dtype),
            grid=grid,
            in_specs=[
                pl.BlockSpec((tr, k * s), lambda i: (i, 0)),
                pl.BlockSpec((k * s, _LANE), lambda i: (0, 0)),
            ],
            out_specs=pl.BlockSpec((tr, _LANE), lambda i: (i, 0)),
            compiler_params=params,
        )(pos2, wbig)
        out = out_packed.reshape(n, h)                          # free reshape
    else:
        # ---- generic row path (lane-dense whenever H % 128 == 0) ----
        # per N-row (f32): out 2xH (double buffered), lane-padded pos 2x128,
        # x_proj/sin/cos temps ~3*min(H/2, 128).
        bytes_per_row = 4 * (2 * h + 2 * _LANE + 3 * min(half_h, _LANE))
        tn = _pick_tile(n, bytes_per_row, vmem_budget_bytes, align=128,
                        min_tile=128)
        grid = (pl.cdiv(n, tn),)
        out = pl.pallas_call(
            _fpe_kernel_rows,
            out_shape=jax.ShapeDtypeStruct((n, h), out_dtype),
            grid=grid,
            in_specs=[
                pl.BlockSpec((tn, s), lambda i: (i, 0)),
                pl.BlockSpec((s, half_h), lambda i: (0, 0)),
            ],
            out_specs=pl.BlockSpec((tn, h), lambda i: (i, 0)),
            compiler_params=params,
        )(pos, w_scaled.T)
    return out.reshape(1, n, h)


# ---------------------------------------------------------------------------
# Module-equivalent setup + pure-JAX reference + tests
# ---------------------------------------------------------------------------
def build_positions(grid_size, spatial_dims):
    """Replicates the module __init__ positions construction."""
    gs = grid_size if isinstance(grid_size, list) else [grid_size] * spatial_dims
    axes = [jnp.linspace(0.0, 1.0, g) for g in gs]
    mesh = jnp.meshgrid(*axes, indexing="ij")       # torch.meshgrid default 'ij'
    positions = jnp.stack(mesh, axis=-1)            # grid_size + [spatial_dims]
    return positions, gs


def reference_forward(positions, pos_emb, scale):
    """Pure-JAX reference mirroring the PyTorch forward."""
    w = pos_emb * scale                                   # (H/2, S)
    x_proj = 2.0 * math.pi * positions @ w.T              # grid + (H/2,)
    pe = jnp.concatenate([jnp.sin(x_proj), jnp.cos(x_proj)], axis=-1)
    hh = pe.shape[-1]
    return pe.reshape(1, -1, hh)


def _run_case(key, grid_size, hidden_size, spatial_dims, scale_vals=None):
    k1, _ = jax.random.split(key)
    pos_emb = jax.random.normal(k1, (hidden_size // 2, spatial_dims),
                                dtype=jnp.float32)        # torch.normal(0,1,...)
    if scale_vals is None:
        scale = jnp.ones((spatial_dims,), dtype=jnp.float32)   # nn.Parameter(ones)
    else:
        scale = jnp.asarray(scale_vals, dtype=jnp.float32)

    positions, gs = build_positions(grid_size, spatial_dims)
    n_patches = math.prod(gs)
    positions_flat = positions.reshape(n_patches, spatial_dims)

    out = learnable_scale_fpe(positions_flat, pos_emb, scale)
    out = jax.block_until_ready(out)

    ref = reference_forward(positions, pos_emb, scale)
    assert out.shape == (1, n_patches, hidden_size), out.shape
    assert jnp.allclose(out, ref, atol=1e-5, rtol=1e-5), "mismatch vs reference"
    return out


if __name__ == "__main__":
    key = jax.random.PRNGKey(0)
    k1, k2, k3 = jax.random.split(key, 3)

    # Case 1 (original demo): H=32 < 128 -> packed lane-dense path (k=4).
    _run_case(k1, grid_size=16, hidden_size=32, spatial_dims=2)

    # Case 2: 3-D grid, H=256 (multiple of 128) -> tiled row path, non-unit scale.
    _run_case(k2, grid_size=[8, 8, 4], hidden_size=256, spatial_dims=3,
              scale_vals=[1.0, 0.5, 2.0])

    # Case 3: ragged N (300 not a multiple of the 128-row tile) -> verifies the
    # clipped-last-block path (no input padding / output slicing).
    _run_case(k3, grid_size=[20, 15], hidden_size=256, spatial_dims=2,
              scale_vals=[1.5, 0.75])

    print("KERNEL_OK")
</pallas_src>

<mosaic_0001>
module attributes {stable_mosaic.version = 11 : i64} {
  func.func @_fpe_kernel_packed(%arg0: i32, %arg1: memref<64x8xf32, #tpu.memory_space<vmem>>, %arg2: memref<8x128xf32, #tpu.memory_space<vmem>>, %arg3: memref<64x128xf32, #tpu.memory_space<vmem>>) attributes {dimension_semantics = [#tpu.dimension_semantics<parallel>], iteration_bounds = array<i64: 1>, scalar_prefetch = 0 : i64, scratch_operands = 0 : i64, tpu.core_type = #tpu.core_type<tc>, window_params = [{transform_indices = @transform_0, window_bounds = array<i64: 64, 8>}, {pipeline_mode = #tpu.pipeline_mode<synchronous>, transform_indices = @transform_1, window_bounds = array<i64: 8, 128>}, {transform_indices = @transform_2, window_bounds = array<i64: 64, 128>}]} {
    %c0 = arith.constant 0 : index
    %c0_0 = arith.constant 0 : index
    %0 = vector.load %arg1[%c0, %c0_0] : memref<64x8xf32, #tpu.memory_space<vmem>>, vector<64x8xf32>
    %c0_1 = arith.constant 0 : index
    %c0_2 = arith.constant 0 : index
    %1 = vector.load %arg2[%c0_1, %c0_2] : memref<8x128xf32, #tpu.memory_space<vmem>>, vector<8x128xf32>
    %cst = arith.constant dense<0.000000e+00> : vector<64x128xf32>
    %2 = tpu.matmul %0, %1, %cst {dimension_numbers = #tpu.dot_dimension_numbers<[1], [0], [0], [1], [0, 0, 1, 1], [], []>} : vector<64x8xf32>, vector<8x128xf32>, vector<64x128xf32> -> vector<64x128xf32>
    %cst_3 = arith.constant 0.636619746 : f32
    %3 = vector.broadcast %cst_3 : f32 to vector<64x128xf32>
    %4 = arith.mulf %2, %3 : vector<64x128xf32>
    %cst_4 = arith.constant 5.000000e-01 : f32
    %5 = vector.broadcast %cst_4 : f32 to vector<64x128xf32>
    %6 = arith.addf %4, %5 : vector<64x128xf32>
    %7 = math.floor %6 : vector<64x128xf32>
    %cst_5 = arith.constant 1.5703125 : f32
    %8 = vector.broadcast %cst_5 : f32 to vector<64x128xf32>
    %9 = arith.mulf %7, %8 : vector<64x128xf32>
    %10 = arith.subf %2, %9 : vector<64x128xf32>
    %cst_6 = arith.constant 4.83751297E-4 : f32
    %11 = vector.broadcast %cst_6 : f32 to vector<64x128xf32>
    %12 = arith.mulf %7, %11 : vector<64x128xf32>
    %13 = arith.subf %10, %12 : vector<64x128xf32>
    %cst_7 = arith.constant 7.549790e-08 : f32
    %14 = vector.broadcast %cst_7 : f32 to vector<64x128xf32>
    %15 = arith.mulf %7, %14 : vector<64x128xf32>
    %16 = arith.subf %13, %15 : vector<64x128xf32>
    %17 = arith.mulf %16, %16 : vector<64x128xf32>
    %cst_8 = arith.constant -1.95152956E-4 : f32
    %18 = vector.broadcast %cst_8 : f32 to vector<64x128xf32>
    %19 = arith.mulf %17, %18 : vector<64x128xf32>
    %cst_9 = arith.constant 0.00833216123 : f32
    %20 = vector.broadcast %cst_9 : f32 to vector<64x128xf32>
    %21 = arith.addf %20, %19 : vector<64x128xf32>
    %22 = arith.mulf %17, %21 : vector<64x128xf32>
    %cst_10 = arith.constant -0.166666552 : f32
    %23 = vector.broadcast %cst_10 : f32 to vector<64x128xf32>
    %24 = arith.addf %23, %22 : vector<64x128xf32>
    %25 = arith.mulf %17, %24 : vector<64x128xf32>
    %cst_11 = arith.constant 1.000000e+00 : f32
    %26 = vector.broadcast %cst_11 : f32 to vector<64x128xf32>
    %27 = arith.addf %26, %25 : vector<64x128xf32>
    %28 = arith.mulf %16, %27 : vector<64x128xf32>
    %cst_12 = arith.constant 2.44331568E-5 : f32
    %29 = vector.broadcast %cst_12 : f32 to vector<64x128xf32>
    %30 = arith.mulf %17, %29 : vector<64x128xf32>
    %cst_13 = arith.constant -0.00138873165 : f32
    %31 = vector.broadcast %cst_13 : f32 to vector<64x128xf32>
    %32 = arith.addf %31, %30 : vector<64x128xf32>
    %33 = arith.mulf %17, %32 : vector<64x128xf32>
    %cst_14 = arith.constant 0.0416666456 : f32
    %34 = vector.broadcast %cst_14 : f32 to vector<64x128xf32>
    %35 = arith.addf %34, %33 : vector<64x128xf32>
    %36 = arith.mulf %17, %35 : vector<64x128xf32>
    %cst_15 = arith.constant -5.000000e-01 : f32
    %37 = vector.broadcast %cst_15 : f32 to vector<64x128xf32>
    %38 = arith.addf %37, %36 : vector<64x128xf32>
    %39 = arith.mulf %17, %38 : vector<64x128xf32>
    %cst_16 = arith.constant 1.000000e+00 : f32
    %40 = vector.broadcast %cst_16 : f32 to vector<64x128xf32>
    %41 = arith.addf %40, %39 : vector<64x128xf32>
    %cst_17 = arith.constant 2.500000e-01 : f32
    %42 = vector.broadcast %cst_17 : f32 to vector<64x128xf32>
    %43 = arith.mulf %7, %42 : vector<64x128xf32>
    %44 = math.floor %43 : vector<64x128xf32>
    %cst_18 = arith.constant 4.000000e+00 : f32
    %45 = vector.broadcast %cst_18 : f32 to vector<64x128xf32>
    %46 = arith.mulf %45, %44 : vector<64x128xf32>
    %47 = arith.subf %7, %46 : vector<64x128xf32>
    %cst_19 = arith.constant 1.000000e+00 : f32
    %48 = vector.broadcast %cst_19 : f32 to vector<64x128xf32>
    %49 = arith.cmpf oeq, %47, %48 : vector<64x128xf32>
    %cst_20 = arith.constant 3.000000e+00 : f32
    %50 = vector.broadcast %cst_20 : f32 to vector<64x128xf32>
    %51 = arith.cmpf oeq, %47, %50 : vector<64x128xf32>
    %52 = arith.ori %49, %51 : vector<64x128xi1>
    %cst_21 = arith.constant 2.000000e+00 : f32
    %53 = vector.broadcast %cst_21 : f32 to vector<64x128xf32>
    %54 = arith.cmpf oeq, %47, %53 : vector<64x128xf32>
    %cst_22 = arith.constant 3.000000e+00 : f32
    %55 = vector.broadcast %cst_22 : f32 to vector<64x128xf32>
    %56 = arith.cmpf oeq, %47, %55 : vector<64x128xf32>
    %57 = arith.ori %54, %56 : vector<64x128xi1>
    %cst_23 = arith.constant -1.000000e+00 : f32
    %cst_24 = arith.constant 1.000000e+00 : f32
    %58 = vector.broadcast %cst_23 : f32 to vector<64x128xf32>
    %59 = vector.broadcast %cst_24 : f32 to vector<64x128xf32>
    %60 = arith.select %57, %58, %59 : vector<64x128xi1>, vector<64x128xf32>
    %cst_25 = arith.constant 1.000000e+00 : f32
    %61 = vector.broadcast %cst_25 : f32 to vector<64x128xf32>
    %62 = arith.cmpf oeq, %47, %61 : vector<64x128xf32>
    %cst_26 = arith.constant 2.000000e+00 : f32
    %63 = vector.broadcast %cst_26 : f32 to vector<64x128xf32>
    %64 = arith.cmpf oeq, %47, %63 : vector<64x128xf32>
    %65 = arith.ori %62, %64 : vector<64x128xi1>
    %cst_27 = arith.constant -1.000000e+00 : f32
    %cst_28 = arith.constant 1.000000e+00 : f32
    %66 = vector.broadcast %cst_27 : f32 to vector<64x128xf32>
    %67 = vector.broadcast %cst_28 : f32 to vector<64x128xf32>
    %68 = arith.select %65, %66, %67 : vector<64x128xi1>, vector<64x128xf32>
    %69 = arith.select %52, %41, %28 : vector<64x128xi1>, vector<64x128xf32>
    %70 = arith.mulf %69, %60 : vector<64x128xf32>
    %71 = arith.select %52, %28, %41 : vector<64x128xi1>, vector<64x128xf32>
    %72 = arith.mulf %71, %68 : vector<64x128xf32>
    %73 = tpu.iota {dimensions = array<i32: 1>} : vector<64x128xi32>
    %c31_i32 = arith.constant 31 : i32
    %74 = vector.broadcast %c31_i32 : i32 to vector<64x128xi32>
    %75 = arith.andi %73, %74 : vector<64x128xi32>
    %c16_i32 = arith.constant 16 : i32
    %76 = vector.broadcast %c16_i32 : i32 to vector<64x128xi32>
    %77 = arith.cmpi slt, %75, %76 : vector<64x128xi32>
    %78 = arith.select %77, %70, %72 : vector<64x128xi1>, vector<64x128xf32>
    %c0_29 = arith.constant 0 : index
    %c0_30 = arith.constant 0 : index
    %79 = vector.load %arg3[%c0_29, %c0_30] : memref<64x128xf32, #tpu.memory_space<vmem>>, vector<64x128xf32>
    tpu.vector_store %arg3[%c0_29, %c0_30], %78 {strides = array<i32>} : memref<64x128xf32, #tpu.memory_space<vmem>>, vector<64x128xf32>,
    return
  }
  func.func @transform_0(%arg0: i32) -> (i32, i32) {
    %c0_i32 = arith.constant 0 : i32
    %c0_i32_0 = arith.constant 0 : i32
    return %arg0, %c0_i32 : i32, i32
  }
  func.func @transform_1(%arg0: i32) -> (i32, i32) {
    %c0_i32 = arith.constant 0 : i32
    %c0_i32_0 = arith.constant 0 : i32
    %c0_i32_1 = arith.constant 0 : i32
    return %c0_i32, %c0_i32_0 : i32, i32
  }
  func.func @transform_2(%arg0: i32) -> (i32, i32) {
    %c0_i32 = arith.constant 0 : i32
    %c0_i32_0 = arith.constant 0 : i32
    return %arg0, %c0_i32 : i32, i32
  }
}

</mosaic_0001>

<llo_original>
// kernel: tpu_custom_call.1
$region0: #{tpu_custom_call.1}
  #allocation0 [shape = 'u32[]', space=smem, size = 0x4, offset = 0x4, fixed_abs, tag = 'smem constant byte address 0x4 - core index']
  #allocation1 [shape = 'u32[144,128]{1,0:T(1,128)}', space=vmem, size = 0x12000, scoped, tag = 'internal scratch']
  %s0 = inlined_call_operand.vmem [shape: f32[64,8], index: 0, kind: input, shape index: {}]
  %s1 = inlined_call_operand.vmem [shape: f32[8,128], index: 1, kind: input, shape index: {}]
  %s2 = inlined_call_operand.hbm [shape: f32[64,128], index: 2, kind: output, shape index: {}]
  %s3 = sld [smem:[#allocation0]]
  $region18: #{tpu_custom_call.1} parent=0
    _
  %s5 = ssub.s32 1, %s3
  %s6 = scalar_select 0, %s5, %s3
  $region1: #{tpu_custom_call.1} parent=0
    #allocation2 [shape = 'u8[32768]{0}', space=vmem, size = 0x8000, scoped, tag = 'output window, operand 0, single buffered']
    #allocation3 [shape = 's32[1]{0}', space=sflag, size = 0x4, scoped, tag = 'scoped memory for tpu_custom_call.1']
    %7 = vsyncpa [#allocation3], 0
    // Predicated region
    $region2: #{tpu_custom_call.1} parent=1 // pred_check
      _
    $region3: #{tpu_custom_call.1} parent=1 // pred_check_branch
      %9 = sbr.rel (0) target = $region5
    $region4: #{tpu_custom_call.1} parent=1 // pred_region
      _
    $region5: #{tpu_custom_call.1} parent=1 // pred_fallthru
      _
    // Predicated region
    $region6: #{tpu_custom_call.1} parent=1 // pred_check
      _
    $region7: #{tpu_custom_call.1} parent=1 // pred_check_branch
      %11 = sbr.rel (0) target = $region9
    $region8: #{tpu_custom_call.1} parent=1 // pred_region
      _
    $region9: #{tpu_custom_call.1} parent=1 // pred_fallthru
      _
    %v12 = vld [vmem:[%s0] sm:$0xff]
    %v13 = vld [vmem:[%s0 + $0x8] sm:$0xff]
    %v14 = vld [vmem:[%s0 + $0x10] sm:$0xff]
    %v15 = vld [vmem:[%s0 + $0x18] sm:$0xff]
    %v16 = vld [vmem:[%s0 + $0x20] sm:$0xff]
    %v17 = vld [vmem:[%s0 + $0x28] sm:$0xff]
    %v18 = vld [vmem:[%s0 + $0x30] sm:$0xff]
    %v19 = vld [vmem:[%s0 + $0x38] sm:$0xff]
    %v20 = vld [vmem:[%s1] sm:$0xff]
    %vm21 = vcmask 64512
    %v23 = vsel %vm21, %v12, 0
    %v26 = vsel %vm21, %v13, 0
    %v29 = vsel %vm21, %v14, 0
    %v32 = vsel %vm21, %v15, 0
    %v35 = vsel %vm21, %v16, 0
    %v38 = vsel %vm21, %v17, 0
    %v41 = vsel %vm21, %v18, 0
    %v44 = vsel %vm21, %v19, 0
    %46 = vmatprep.subr.mxu0 0.0
    %47 = vmatpush1.msra.mxu0 %v20
    %48 = vmatprep.subr.mxu0 0.0
    %49 = vmatpush1.msra.mxu0 0.0
    %50 = vmatprep.subr.mxu0 0.0
    %51 = vmatpush1.msra.mxu0 0.0
    %52 = vmatprep.subr.mxu0 0.0
    %53 = vmatpush1.msra.mxu0 0.0
    %54 = vmatprep.subr.mxu0 0.0
    %55 = vmatpush1.msra.mxu0 0.0
    %56 = vmatprep.subr.mxu0 0.0
    %57 = vmatpush1.msra.mxu0 0.0
    %58 = vmatprep.subr.mxu0 0.0
    %59 = vmatpush1.msra.mxu0 0.0
    %60 = vmatprep.subr.mxu0 0.0
    %61 = vmatpush1.msra.mxu0 0.0
    %62 = vmatprep.subr.mxu0 0.0
    %63 = vmatpush1.msra.mxu0 0.0
    %64 = vmatprep.subr.mxu0 0.0
    %65 = vmatpush1.msra.mxu0 0.0
    %66 = vmatprep.subr.mxu0 0.0
    %67 = vmatpush1.msra.mxu0 0.0
    %68 = vmatprep.subr.mxu0 0.0
    %69 = vmatpush1.msra.mxu0 0.0
    %70 = vmatprep.subr.mxu0 0.0
    %71 = vmatpush1.msra.mxu0 0.0
    %72 = vmatprep.subr.mxu0 0.0
    %73 = vmatpush1.msra.mxu0 0.0
    %74 = vmatprep.subr.mxu0 0.0
    %75 = vmatpush1.msra.mxu0 0.0
    %76 = vmatprep.subr.mxu0 0.0
    %77 = vmatpush1.msra.mxu0 0.0
    %78 = vmatprep.subr.mxu0 0.0
    %79 = vmatpush1.msra.mxu0 0.0
    %80 = vmatprep.subr.mxu0 0.0
    %81 = vmatpush1.msra.mxu0 0.0
    %82 = vmatprep.subr.mxu0 0.0
    %83 = vmatpush1.msra.mxu0 0.0
    %84 = vmatprep.subr.mxu0 0.0
    %85 = vmatpush1.msra.mxu0 0.0
    %86 = vmatprep.subr.mxu0 0.0
    %87 = vmatpush1.msra.mxu0 0.0
    %88 = vmatprep.subr.mxu0 0.0
    %89 = vmatpush1.msra.mxu0 0.0
    %90 = vmatprep.subr.mxu0 0.0
    %91 = vmatpush1.msra.mxu0 0.0
    %92 = vmatprep.subr.mxu0 0.0
    %93 = vmatpush1.msra.mxu0 0.0
    %94 = vmatprep.subr.mxu0 0.0
    %95 = vmatpush1.msra.mxu0 0.0
    %96 = vmatprep.subr.mxu0 0.0
    %97 = vmatpush1.msra.mxu0 0.0
    %98 = vmatprep.subr.mxu0 0.0
    %99 = vmatpush1.msra.mxu0 0.0
    %100 = vmatprep.subr.mxu0 0.0
    %101 = vmatpush1.msra.mxu0 0.0
    %102 = vmatprep.subr.mxu0 0.0
    %103 = vmatpush1.msra.mxu0 0.0
    %104 = vmatprep.subr.mxu0 0.0
    %105 = vmatpush1.msra.mxu0 0.0
    %106 = vmatprep.subr.mxu0 0.0
    %107 = vmatpush1.msra.mxu0 0.0
    %108 = vmatprep.subr.mxu0 0.0
    %109 = vmatpush1.msra.mxu0 0.0
    %110 = vmatprep.mubr.f32.mxu0 0.0
    %111 = vmatmul.mubr.f32.gmra.mrb[0].mxu0 %v23
    %v112 = vpop.f32.mrb[0].mxu0
    %v113 = vadd.f32 0.0, %v112
    %v114 = vpop.f32.mrb[0].mxu0
    %115 = vmatprep.mubr.f32.mxu0 0.0
    %116 = vmatmul.mubr.f32.gmra.mrb[0].mxu0 %v26
    %v117 = vpop.f32.mrb[0].mxu0
    %v118 = vadd.f32 0.0, %v117
    %v119 = vpop.f32.mrb[0].mxu0
    %120 = vmatprep.mubr.f32.mxu0 0.0
    %121 = vmatmul.mubr.f32.gmra.mrb[0].mxu0 %v29
    %v122 = vpop.f32.mrb[0].mxu0
    %v123 = vadd.f32 0.0, %v122
    %v124 = vpop.f32.mrb[0].mxu0
    %125 = vmatprep.mubr.f32.mxu0 0.0
    %126 = vmatmul.mubr.f32.gmra.mrb[0].mxu0 %v32
    %v127 = vpop.f32.mrb[0].mxu0
    %v128 = vadd.f32 0.0, %v127
    %v129 = vpop.f32.mrb[0].mxu0
    %130 = vmatprep.mubr.f32.mxu0 0.0
    %131 = vmatmul.mubr.f32.gmra.mrb[0].mxu0 %v35
    %v132 = vpop.f32.mrb[0].mxu0
    %v133 = vadd.f32 0.0, %v132
    %v134 = vpop.f32.mrb[0].mxu0
    %135 = vmatprep.mubr.f32.mxu0 0.0
    %136 = vmatmul.mubr.f32.gmra.mrb[0].mxu0 %v38
    %v137 = vpop.f32.mrb[0].mxu0
    %v138 = vadd.f32 0.0, %v137
    %v139 = vpop.f32.mrb[0].mxu0
    %140 = vmatprep.mubr.f32.mxu0 0.0
    %141 = vmatmul.mubr.f32.gmra.mrb[0].mxu0 %v41
    %v142 = vpop.f32.mrb[0].mxu0
    %v143 = vadd.f32 0.0, %v142
    %v144 = vpop.f32.mrb[0].mxu0
    %145 = vmatprep.mubr.f32.mxu0 0.0
    %146 = vmatmul.mubr.f32.gmra.mrb[0].mxu0 %v44
    %v147 = vpop.f32.mrb[0].mxu0
    %v148 = vadd.f32 0.0, %v147
    %v149 = vpop.f32.mrb[0].mxu0
    %150 = vdwg.mxu0
    %v151 = vmul.f32 %v113, 0.63661975
    %v152 = vmul.f32 %v118, 0.63661975
    %v153 = vmul.f32 %v123, 0.63661975
    %v154 = vmul.f32 %v128, 0.63661975
    %v155 = vmul.f32 %v133, 0.63661975
    %v156 = vmul.f32 %v138, 0.63661975
    %v157 = vmul.f32 %v143, 0.63661975
    %v158 = vmul.f32 %v148, 0.63661975
    %v159 = vadd.f32 %v151, 0.5
    %v160 = vadd.f32 %v152, 0.5
    %v161 = vadd.f32 %v153, 0.5
    %v162 = vadd.f32 %v154, 0.5
    %v163 = vadd.f32 %v155, 0.5
    %v164 = vadd.f32 %v156, 0.5
    %v165 = vadd.f32 %v157, 0.5
    %v166 = vadd.f32 %v158, 0.5
    %v167 = vfloor.f32 %v159
    %v168 = vfloor.f32 %v160
    %v169 = vfloor.f32 %v161
    %v170 = vfloor.f32 %v162
    %v171 = vfloor.f32 %v163
    %v172 = vfloor.f32 %v164
    %v173 = vfloor.f32 %v165
    %v174 = vfloor.f32 %v166
    %v175 = vmul.f32 %v167, 1.5703125
    %v176 = vmul.f32 %v168, 1.5703125
    %v177 = vmul.f32 %v169, 1.5703125
    %v178 = vmul.f32 %v170, 1.5703125
    %v179 = vmul.f32 %v171, 1.5703125
    %v180 = vmul.f32 %v172, 1.5703125
    %v181 = vmul.f32 %v173, 1.5703125
    %v182 = vmul.f32 %v174, 1.5703125
    %v183 = vsub.f32 %v113, %v175
    %v184 = vsub.f32 %v118, %v176
    %v185 = vsub.f32 %v123, %v177
    %v186 = vsub.f32 %v128, %v178
    %v187 = vsub.f32 %v133, %v179
    %v188 = vsub.f32 %v138, %v180
    %v189 = vsub.f32 %v143, %v181
    %v190 = vsub.f32 %v148, %v182
    %v191 = vmul.f32 %v167, 0.0004837513
    %v192 = vmul.f32 %v168, 0.0004837513
    %v193 = vmul.f32 %v169, 0.0004837513
    %v194 = vmul.f32 %v170, 0.0004837513
    %v195 = vmul.f32 %v171, 0.0004837513
    %v196 = vmul.f32 %v172, 0.0004837513
    %v197 = vmul.f32 %v173, 0.0004837513
    %v198 = vmul.f32 %v174, 0.0004837513
    %v199 = vsub.f32 %v183, %v191
    %v200 = vsub.f32 %v184, %v192
    %v201 = vsub.f32 %v185, %v193
    %v202 = vsub.f32 %v186, %v194
    %v203 = vsub.f32 %v187, %v195
    %v204 = vsub.f32 %v188, %v196
    %v205 = vsub.f32 %v189, %v197
    %v206 = vsub.f32 %v190, %v198
    %v207 = vmul.f32 %v167, 7.54979e-08
    %v208 = vmul.f32 %v168, 7.54979e-08
    %v209 = vmul.f32 %v169, 7.54979e-08
    %v210 = vmul.f32 %v170, 7.54979e-08
    %v211 = vmul.f32 %v171, 7.54979e-08
    %v212 = vmul.f32 %v172, 7.54979e-08
    %v213 = vmul.f32 %v173, 7.54979e-08
    %v214 = vmul.f32 %v174, 7.54979e-08
    %v215 = vsub.f32 %v199, %v207
    %v216 = vsub.f32 %v200, %v208
    %v217 = vsub.f32 %v201, %v209
    %v218 = vsub.f32 %v202, %v210
    %v219 = vsub.f32 %v203, %v211
    %v220 = vsub.f32 %v204, %v212
    %v221 = vsub.f32 %v205, %v213
    %v222 = vsub.f32 %v206, %v214
    %v223 = vmul.f32 %v215, %v215
    %v224 = vmul.f32 %v216, %v216
    %v225 = vmul.f32 %v217, %v217
    %v226 = vmul.f32 %v218, %v218
    %v227 = vmul.f32 %v219, %v219
    %v228 = vmul.f32 %v220, %v220
    %v229 = vmul.f32 %v221, %v221
    %v230 = vmul.f32 %v222, %v222
    %v231 = vmul.f32 %v223, -0.00019515296
    %v232 = vmul.f32 %v224, -0.00019515296
    %v233 = vmul.f32 %v225, -0.00019515296
    %v234 = vmul.f32 %v226, -0.00019515296
    %v235 = vmul.f32 %v227, -0.00019515296
    %v236 = vmul.f32 %v228, -0.00019515296
    %v237 = vmul.f32 %v229, -0.00019515296
    %v238 = vmul.f32 %v230, -0.00019515296
    %v239 = vadd.f32 %v231, 0.008332161
    %v240 = vadd.f32 %v232, 0.008332161
    %v241 = vadd.f32 %v233, 0.008332161
    %v242 = vadd.f32 %v234, 0.008332161
    %v243 = vadd.f32 %v235, 0.008332161
    %v244 = vadd.f32 %v236, 0.008332161
    %v245 = vadd.f32 %v237, 0.008332161
    %v246 = vadd.f32 %v238, 0.008332161
    %v247 = vmul.f32 %v223, %v239
    %v248 = vmul.f32 %v224, %v240
    %v249 = vmul.f32 %v225, %v241
    %v250 = vmul.f32 %v226, %v242
    %v251 = vmul.f32 %v227, %v243
    %v252 = vmul.f32 %v228, %v244
    %v253 = vmul.f32 %v229, %v245
    %v254 = vmul.f32 %v230, %v246
    %v255 = vadd.f32 %v247, -0.16666655
    %v256 = vadd.f32 %v248, -0.16666655
    %v257 = vadd.f32 %v249, -0.16666655
    %v258 = vadd.f32 %v250, -0.16666655
    %v259 = vadd.f32 %v251, -0.16666655
    %v260 = vadd.f32 %v252, -0.16666655
    %v261 = vadd.f32 %v253, -0.16666655
    %v262 = vadd.f32 %v254, -0.16666655
    %v263 = vmul.f32 %v223, %v255
    %v264 = vmul.f32 %v224, %v256
    %v265 = vmul.f32 %v225, %v257
    %v266 = vmul.f32 %v226, %v258
    %v267 = vmul.f32 %v227, %v259
    %v268 = vmul.f32 %v228, %v260
    %v269 = vmul.f32 %v229, %v261
    %v270 = vmul.f32 %v230, %v262
    %v271 = vadd.f32 %v263, 1.0
    %v272 = vadd.f32 %v264, 1.0
    %v273 = vadd.f32 %v265, 1.0
    %v274 = vadd.f32 %v266, 1.0
    %v275 = vadd.f32 %v267, 1.0
    %v276 = vadd.f32 %v268, 1.0
    %v277 = vadd.f32 %v269, 1.0
    %v278 = vadd.f32 %v270, 1.0
    %v279 = vmul.f32 %v215, %v271
    %v280 = vmul.f32 %v216, %v272
    %v281 = vmul.f32 %v217, %v273
    %v282 = vmul.f32 %v218, %v274
    %v283 = vmul.f32 %v219, %v275
    %v284 = vmul.f32 %v220, %v276
    %v285 = vmul.f32 %v221, %v277
    %v286 = vmul.f32 %v222, %v278
    %v287 = vmul.f32 %v223, 2.4433157e-05
    %v288 = vmul.f32 %v224, 2.4433157e-05
    %v289 = vmul.f32 %v225, 2.4433157e-05
    %v290 = vmul.f32 %v226, 2.4433157e-05
    %v291 = vmul.f32 %v227, 2.4433157e-05
    %v292 = vmul.f32 %v228, 2.4433157e-05
    %v293 = vmul.f32 %v229, 2.4433157e-05
    %v294 = vmul.f32 %v230, 2.4433157e-05
    %v295 = vadd.f32 %v287, -0.0013887316
    %v296 = vadd.f32 %v288, -0.0013887316
    %v297 = vadd.f32 %v289, -0.0013887316
    %v298 = vadd.f32 %v290, -0.0013887316
    %v299 = vadd.f32 %v291, -0.0013887316
    %v300 = vadd.f32 %v292, -0.0013887316
    %v301 = vadd.f32 %v293, -0.0013887316
    %v302 = vadd.f32 %v294, -0.0013887316
    %v303 = vmul.f32 %v223, %v295
    %v304 = vmul.f32 %v224, %v296
    %v305 = vmul.f32 %v225, %v297
    %v306 = vmul.f32 %v226, %v298
    %v307 = vmul.f32 %v227, %v299
    %v308 = vmul.f32 %v228, %v300
    %v309 = vmul.f32 %v229, %v301
    %v310 = vmul.f32 %v230, %v302
    %v311 = vadd.f32 %v303, 0.041666646
    %v312 = vadd.f32 %v304, 0.041666646
    %v313 = vadd.f32 %v305, 0.041666646
    %v314 = vadd.f32 %v306, 0.041666646
    %v315 = vadd.f32 %v307, 0.041666646
    %v316 = vadd.f32 %v308, 0.041666646
    %v317 = vadd.f32 %v309, 0.041666646
    %v318 = vadd.f32 %v310, 0.041666646
    %v319 = vmul.f32 %v223, %v311
    %v320 = vmul.f32 %v224, %v312
    %v321 = vmul.f32 %v225, %v313
    %v322 = vmul.f32 %v226, %v314
    %v323 = vmul.f32 %v227, %v315
    %v324 = vmul.f32 %v228, %v316
    %v325 = vmul.f32 %v229, %v317
    %v326 = vmul.f32 %v230, %v318
    %v327 = vadd.f32 %v319, -0.5
    %v328 = vadd.f32 %v320, -0.5
    %v329 = vadd.f32 %v321, -0.5
    %v330 = vadd.f32 %v322, -0.5
    %v331 = vadd.f32 %v323, -0.5
    %v332 = vadd.f32 %v324, -0.5
    %v333 = vadd.f32 %v325, -0.5
    %v334 = vadd.f32 %v326, -0.5
    %v335 = vmul.f32 %v223, %v327
    %v336 = vmul.f32 %v224, %v328
    %v337 = vmul.f32 %v225, %v329
    %v338 = vmul.f32 %v226, %v330
    %v339 = vmul.f32 %v227, %v331
    %v340 = vmul.f32 %v228, %v332
    %v341 = vmul.f32 %v229, %v333
    %v342 = vmul.f32 %v230, %v334
    %v343 = vadd.f32 %v335, 1.0
    %v344 = vadd.f32 %v336, 1.0
    %v345 = vadd.f32 %v337, 1.0
    %v346 = vadd.f32 %v338, 1.0
    %v347 = vadd.f32 %v339, 1.0
    %v348 = vadd.f32 %v340, 1.0
    %v349 = vadd.f32 %v341, 1.0
    %v350 = vadd.f32 %v342, 1.0
    %v351 = vmul.f32 %v167, 0.25
    %v352 = vmul.f32 %v168, 0.25
    %v353 = vmul.f32 %v169, 0.25
    %v354 = vmul.f32 %v170, 0.25
    %v355 = vmul.f32 %v171, 0.25
    %v356 = vmul.f32 %v172, 0.25
    %v357 = vmul.f32 %v173, 0.25
    %v358 = vmul.f32 %v174, 0.25
    %v359 = vfloor.f32 %v351
    %v360 = vfloor.f32 %v352
    %v361 = vfloor.f32 %v353
    %v362 = vfloor.f32 %v354
    %v363 = vfloor.f32 %v355
    %v364 = vfloor.f32 %v356
    %v365 = vfloor.f32 %v357
    %v366 = vfloor.f32 %v358
    %v367 = vmul.f32 %v359, 4.0
    %v368 = vmul.f32 %v360, 4.0
    %v369 = vmul.f32 %v361, 4.0
    %v370 = vmul.f32 %v362, 4.0
    %v371 = vmul.f32 %v363, 4.0
    %v372 = vmul.f32 %v364, 4.0
    %v373 = vmul.f32 %v365, 4.0
    %v374 = vmul.f32 %v366, 4.0
    %v375 = vsub.f32 %v167, %v367
    %v376 = vsub.f32 %v168, %v368
    %v377 = vsub.f32 %v169, %v369
    %v378 = vsub.f32 %v170, %v370
    %v379 = vsub.f32 %v171, %v371
    %v380 = vsub.f32 %v172, %v372
    %v381 = vsub.f32 %v173, %v373
    %v382 = vsub.f32 %v174, %v374
    %vm383 = vcmp.eq.f32.partialorder %v375, 1.0
    %vm384 = vcmp.eq.f32.partialorder %v376, 1.0
    %vm385 = vcmp.eq.f32.partialorder %v377, 1.0
    %vm386 = vcmp.eq.f32.partialorder %v378, 1.0
    %vm387 = vcmp.eq.f32.partialorder %v379, 1.0
    %vm388 = vcmp.eq.f32.partialorder %v380, 1.0
    %vm389 = vcmp.eq.f32.partialorder %v381, 1.0
    %vm390 = vcmp.eq.f32.partialorder %v382, 1.0
    %vm391 = vcmp.eq.f32.partialorder %v375, 3.0
    %vm392 = vcmp.eq.f32.partialorder %v376, 3.0
    %vm393 = vcmp.eq.f32.partialorder %v377, 3.0
    %vm394 = vcmp.eq.f32.partialorder %v378, 3.0
    %vm395 = vcmp.eq.f32.partialorder %v379, 3.0
    %vm396 = vcmp.eq.f32.partialorder %v380, 3.0
    %vm397 = vcmp.eq.f32.partialorder %v381, 3.0
    %vm398 = vcmp.eq.f32.partialorder %v382, 3.0
    %vm399 = vmor %vm383, %vm391
    %vm400 = vmor %vm384, %vm392
    %vm401 = vmor %vm385, %vm393
    %vm402 = vmor %vm386, %vm394
    %vm403 = vmor %vm387, %vm395
    %vm404 = vmor %vm388, %vm396
    %vm405 = vmor %vm389, %vm397
    %vm406 = vmor %vm390, %vm398
    %vm407 = vcmp.eq.f32.partialorder %v375, 2.0
    %vm408 = vcmp.eq.f32.partialorder %v376, 2.0
    %vm409 = vcmp.eq.f32.partialorder %v377, 2.0
    %vm410 = vcmp.eq.f32.partialorder %v378, 2.0
    %vm411 = vcmp.eq.f32.partialorder %v379, 2.0
    %vm412 = vcmp.eq.f32.partialorder %v380, 2.0
    %vm413 = vcmp.eq.f32.partialorder %v381, 2.0
    %vm414 = vcmp.eq.f32.partialorder %v382, 2.0
    %vm415 = vmor %vm407, %vm391
    %vm416 = vmor %vm408, %vm392
    %vm417 = vmor %vm409, %vm393
    %vm418 = vmor %vm410, %vm394
    %vm419 = vmor %vm411, %vm395
    %vm420 = vmor %vm412, %vm396
    %vm421 = vmor %vm413, %vm397
    %vm422 = vmor %vm414, %vm398
    %v423 = vsel %vm415, -1.0, 1.0
    %v424 = vsel %vm416, -1.0, 1.0
    %v425 = vsel %vm417, -1.0, 1.0
    %v426 = vsel %vm418, -1.0, 1.0
    %v427 = vsel %vm419, -1.0, 1.0
    %v428 = vsel %vm420, -1.0, 1.0
    %v429 = vsel %vm421, -1.0, 1.0
    %v430 = vsel %vm422, -1.0, 1.0
    %vm431 = vmor %vm383, %vm407
    %vm432 = vmor %vm384, %vm408
    %vm433 = vmor %vm385, %vm409
    %vm434 = vmor %vm386, %vm410
    %vm435 = vmor %vm387, %vm411
    %vm436 = vmor %vm388, %vm412
    %vm437 = vmor %vm389, %vm413
    %vm438 = vmor %vm390, %vm414
    %v439 = vsel %vm431, -1.0, 1.0
    %v440 = vsel %vm432, -1.0, 1.0
    %v441 = vsel %vm433, -1.0, 1.0
    %v442 = vsel %vm434, -1.0, 1.0
    %v443 = vsel %vm435, -1.0, 1.0
    %v444 = vsel %vm436, -1.0, 1.0
    %v445 = vsel %vm437, -1.0, 1.0
    %v446 = vsel %vm438, -1.0, 1.0
    %v447 = vsel %vm399, %v343, %v279
    %v448 = vsel %vm400, %v344, %v280
    %v449 = vsel %vm401, %v345, %v281
    %v450 = vsel %vm402, %v346, %v282
    %v451 = vsel %vm403, %v347, %v283
    %v452 = vsel %vm404, %v348, %v284
    %v453 = vsel %vm405, %v349, %v285
    %v454 = vsel %vm406, %v350, %v286
    %v455 = vmul.f32 %v447, %v423
    %v456 = vmul.f32 %v448, %v424
    %v457 = vmul.f32 %v449, %v425
    %v458 = vmul.f32 %v450, %v426
    %v459 = vmul.f32 %v451, %v427
    %v460 = vmul.f32 %v452, %v428
    %v461 = vmul.f32 %v453, %v429
    %v462 = vmul.f32 %v454, %v430
    %v463 = vsel %vm399, %v279, %v343
    %v464 = vsel %vm400, %v280, %v344
    %v465 = vsel %vm401, %v281, %v345
    %v466 = vsel %vm402, %v282, %v346
    %v467 = vsel %vm403, %v283, %v347
    %v468 = vsel %vm404, %v284, %v348
    %v469 = vsel %vm405, %v285, %v349
    %v470 = vsel %vm406, %v286, %v350
    %v471 = vmul.f32 %v463, %v439
    %v472 = vmul.f32 %v464, %v440
    %v473 = vmul.f32 %v465, %v441
    %v474 = vmul.f32 %v466, %v442
    %v475 = vmul.f32 %v467, %v443
    %v476 = vmul.f32 %v468, %v444
    %v477 = vmul.f32 %v469, %v445
    %v478 = vmul.f32 %v470, %v446
    %v479 = vlaneseq
    %v480 = vand.u32 %v479, 127
    %v481 = vand.u32 %v480, 31
    %vm482 = vcmp.lt.s32.totalorder %v481, 16
    %v483 = vsel %vm482, %v455, %v471
    %v484 = vsel %vm482, %v456, %v472
    %v485 = vsel %vm482, %v457, %v473
    %v486 = vsel %vm482, %v458, %v474
    %v487 = vsel %vm482, %v459, %v475
    %v488 = vsel %vm482, %v460, %v476
    %v489 = vsel %vm482, %v461, %v477
    %v490 = vsel %vm482, %v462, %v478
    %491 = vst [vmem:[#allocation2] sm:$0xff] %v483
    %492 = vst [vmem:[#allocation2 + $0x8] sm:$0xff] %v484
    %493 = vst [vmem:[#allocation2 + $0x10] sm:$0xff] %v485
    %494 = vst [vmem:[#allocation2 + $0x18] sm:$0xff] %v486
    %495 = vst [vmem:[#allocation2 + $0x20] sm:$0xff] %v487
    %496 = vst [vmem:[#allocation2 + $0x28] sm:$0xff] %v488
    %497 = vst [vmem:[#allocation2 + $0x30] sm:$0xff] %v489
    %498 = vst [vmem:[#allocation2 + $0x38] sm:$0xff] %v490
    // Predicated region
    $region10: #{tpu_custom_call.1} parent=1 // pred_check
      _
    $region11: #{tpu_custom_call.1} parent=1 // pred_check_branch
      %500 = sbr.rel (0) target = $region13
    $region12: #{tpu_custom_call.1} parent=1 // pred_region
      %s502 = ssub.s32 1024, 1024
      %503 = vsyncadd [#allocation3], %s502
      %s504 = sshll.u32 [#allocation2], 4
      %s505 = int_to_ptr.vmem [resolvable:$true] %s504
      %510 = dma.vmem_to_hbm [thread:$0]  %s505, 1024, %s2, [#allocation3], 128, 128, 8
    $region13: #{tpu_custom_call.1} parent=1 // pred_fallthru
      _
    // Predicated region
    $region14: #{tpu_custom_call.1} parent=1 // pred_check
      _
    $region15: #{tpu_custom_call.1} parent=1 // pred_check_branch
      %512 = sbr.rel (0) target = $region17
    $region16: #{tpu_custom_call.1} parent=1 // pred_region
      %513 = dma.done [#allocation3], 1024
    $region17: #{tpu_custom_call.1} parent=1 // pred_fallthru
      _
    %514 = vsyncpa [#allocation3], 1

</llo_original>
